<compile_context>
chip_gen: v6e
topology: v6e:2x2x1
jax: 0.10.0
libtpu: 0.0.40
codegen_flags: <defaults>
</compile_context>

<pallas_src>
import functools

import jax
import jax.numpy as jnp
from jax.experimental import pallas as pl
from jax.experimental.pallas import tpu as pltpu


# ---------------------------------------------------------------------------
# Fused kernel: all layers, all heads, final linear
# ---------------------------------------------------------------------------
def _fused_gat_kernel(*refs, nlayers, nheads, nhid, alpha):
    # refs layout:
    #   [0]          mask     (N, N) int8   (adj > 0)
    #   [1]          x        (N, F0) bf16
    #   [2+2l]       W_split  (P_l, Fin_p, H_l*Fout_l) bf16  (P_l = prev heads)
    #   [3+2l]       A_block  (H_l*Fout_l, 2*H_l) bf16 block-diag [a1.. | a2..]
    #   [2+2L]       lin_w    (H_last, Fout_last, pad_cls) bf16
    #   [3+2L]       lin_b    (1, pad_cls) f32
    #   [4+2L]       out      (N, pad_cls) f32
    mask_ref = refs[0]
    x_ref = refs[1]
    lin_w_ref = refs[2 + 2 * nlayers]
    lin_b_ref = refs[3 + 2 * nlayers]
    out_ref = refs[4 + 2 * nlayers]

    neg = jnp.float32(-9e15)
    # int8 adjacency mask -> boolean, computed ONCE, shared by all heads/layers
    adj_ok = mask_ref[...].astype(jnp.float32) > 0.0            # (N, N)

    # per-previous-head activation slabs (bf16); layer 0 "previous heads" = [x]
    acts = [x_ref[...]]

    for l in range(nlayers):
        w_ref = refs[2 + 2 * l]
        a_ref = refs[3 + 2 * l]
        h_l = nheads[l]
        f_l = nhid[l]

        # One fused matmul per previous-head slab: all heads of this layer come
        # out already concatenated along lanes (no in-kernel concat/relayout).
        wh = jnp.dot(acts[0], w_ref[0], preferred_element_type=jnp.float32)
        for p in range(1, len(acts)):
            wh = wh + jnp.dot(acts[p], w_ref[p], preferred_element_type=jnp.float32)
        wh_bf = wh.astype(jnp.bfloat16)                          # (N, H*Fout)

        # Every head's (a1, a2) attention projections in ONE MXU op.
        f_all = jnp.dot(wh_bf, a_ref[...], preferred_element_type=jnp.float32)  # (N, 2H)
        # Single small transpose per layer (was H per-head column transposes).
        f_t = jnp.transpose(f_all)                               # (2H, N)

        new_acts = []
        for hd in range(h_l):
            # e[i, j] = (Wh_i . a1) + (Wh_j . a2)
            e = f_all[:, hd:hd + 1] + f_t[h_l + hd:h_l + hd + 1, :]        # (N, N)
            e = jnp.where(e > 0, e, jnp.float32(alpha) * e)                # LeakyReLU
            e = jnp.where(adj_ok, e, neg)                                  # mask (VPU select)

            # softmax over neighbors (f32 stats, EUP approx reciprocal)
            e = e - jnp.max(e, axis=-1, keepdims=True)
            p_ = jnp.exp(e)
            inv = pl.reciprocal(jnp.sum(p_, axis=-1, keepdims=True), approx=True)
            attn = (p_ * inv).astype(jnp.bfloat16)

            # aggregate with this head's slice of the fused Wh, then ELU.
            agg = jnp.dot(attn, wh_bf[:, hd * f_l:(hd + 1) * f_l],
                          preferred_element_type=jnp.float32)              # (N, Fout)
            # ELU: exp(x)-1 on the negative branch (expm1 has no guaranteed
            # Mosaic lowering; f32 error here is well below bf16 matmul noise).
            act = jnp.where(agg > 0, agg, jnp.exp(agg) - 1.0)
            new_acts.append(act.astype(jnp.bfloat16))
        acts = new_acts

    # Final linear as a sum of per-head partial matmuls (concat folded in);
    # output slab is lane-dense (128-padded) so the only HBM store is unmasked.
    out = jnp.dot(acts[0], lin_w_ref[0], preferred_element_type=jnp.float32)
    for p in range(1, len(acts)):
        out = out + jnp.dot(acts[p], lin_w_ref[p], preferred_element_type=jnp.float32)
    out_ref[...] = out + lin_b_ref[...]


# ---------------------------------------------------------------------------
# One-time parameter preparation (hoisted out of the per-call path)
# ---------------------------------------------------------------------------
def prepare_params(params):
    """Reshape / pre-cast PyTorch-style params into kernel-ready bf16 layouts."""
    prev_heads = 1
    Ws, As = [], []
    for layer in params["layers"]:
        W = layer["W"]                       # (H, Fin, Fout) f32
        a = layer["a"]                       # (H, 2, Fout) f32  ([*,0]=a1, [*,1]=a2)
        H, Fin, Fout = W.shape
        # fuse heads into lanes: (Fin, H*Fout), then split rows per previous head
        Wf = jnp.transpose(W, (1, 0, 2)).reshape(Fin, H * Fout)
        Wf = Wf.reshape(prev_heads, Fin // prev_heads, H * Fout).astype(jnp.bfloat16)
        Ws.append(Wf)
        # block-diagonal attention projection: cols [a1_0..a1_{H-1} | a2_0..a2_{H-1}]
        A = jnp.zeros((H * Fout, 2 * H), jnp.float32)
        for hd in range(H):
            A = A.at[hd * Fout:(hd + 1) * Fout, hd].set(a[hd, 0])
            A = A.at[hd * Fout:(hd + 1) * Fout, H + hd].set(a[hd, 1])
        As.append(A.astype(jnp.bfloat16))
        prev_heads = H

    in_dim, nclass = params["lin_w"].shape
    pad_cls = ((nclass + 127) // 128) * 128            # lane-dense output slab
    lw = jnp.zeros((in_dim, pad_cls), jnp.float32).at[:, :nclass].set(params["lin_w"])
    lw = lw.reshape(prev_heads, in_dim // prev_heads, pad_cls).astype(jnp.bfloat16)
    lb = jnp.zeros((1, pad_cls), jnp.float32).at[:, :nclass].set(params["lin_b"])
    return {"W": Ws, "A": As, "lin_w": lw, "lin_b": lb}


def _vmem_limit_bytes():
    """Generation-aware VMEM budget: ~96 MiB on 128 MiB parts, ~48 MiB on v7x."""
    try:
        cap = int(pltpu.get_tpu_info().vmem_capacity_bytes)
    except Exception:
        cap = 64 * 1024 * 1024                 # conservative (v7x-sized) fallback
    return int(min(cap * 3 // 4, 100 * 1024 * 1024))


# ---------------------------------------------------------------------------
# Jitted forward wrapper
# ---------------------------------------------------------------------------
@functools.partial(jax.jit, static_argnames=("alpha", "nclass"))
def fully_connected_gat_forward(prepped, x, adj, *, alpha, nclass):
    """x: (N, nfeat), adj: (N, N) -> (N, nclass).  Dropout (eval mode) omitted."""
    n = x.shape[0]
    Ws, As = prepped["W"], prepped["A"]
    nlayers = len(Ws)
    nheads = tuple(int(A.shape[1]) // 2 for A in As)
    nhid = tuple(int(A.shape[0]) // h for A, h in zip(As, nheads))
    pad_cls = int(prepped["lin_w"].shape[-1])

    # compact int8 adjacency mask (4x less DMA/VMEM than an f32 additive bias)
    mask = (adj > 0).astype(jnp.int8)
    x_bf = x.astype(jnp.bfloat16)

    operands = [mask, x_bf]
    for W, A in zip(Ws, As):
        operands += [W, A]
    operands += [prepped["lin_w"], prepped["lin_b"]]

    # advisory cost estimate for XLA scheduling around the custom call
    flops, trans = 0, 0
    fin = x.shape[1]
    for h_, f_ in zip(nheads, nhid):
        flops += 2 * n * fin * h_ * f_                  # fused W matmul
        flops += 2 * n * (h_ * f_) * (2 * h_)           # batched attention proj
        flops += h_ * (2 * n * n * f_ + 10 * n * n)     # aggregation + softmax elemwise
        trans += h_ * (n * n + n * f_)                  # softmax exp + ELU exp
        fin = h_ * f_
    flops += 2 * n * fin * pad_cls
    bytes_accessed = sum(int(op.size) * op.dtype.itemsize for op in operands) \
        + n * pad_cls * 4

    kernel = functools.partial(_fused_gat_kernel, nlayers=nlayers, nheads=nheads,
                               nhid=nhid, alpha=float(alpha))
    vmem = pl.BlockSpec(memory_space=pltpu.MemorySpace.VMEM)

    out_pad = pl.pallas_call(
        kernel,
        out_shape=jax.ShapeDtypeStruct((n, pad_cls), jnp.float32),
        in_specs=[vmem] * len(operands),
        out_specs=vmem,
        compiler_params=pltpu.CompilerParams(vmem_limit_bytes=_vmem_limit_bytes()),
        cost_estimate=pl.CostEstimate(
            flops=int(flops), transcendentals=int(trans),
            bytes_accessed=int(bytes_accessed)),
    )(*operands)
    return out_pad[:, :nclass]


# ---------------------------------------------------------------------------
# Parameter construction (deterministic, synthetic) + pure-JAX reference
# ---------------------------------------------------------------------------
def init_params(key, nfeat, nclass, nheads_list, nhid_list):
    params = {"layers": []}
    in_dim = nfeat
    for nheads, nhid in zip(nheads_list, nhid_list):
        key, k1, k2 = jax.random.split(key, 3)
        w = jax.random.normal(k1, (nheads, in_dim, nhid), jnp.float32) * 0.1
        # a[:, 0, :] plays the role of pyGAT's a[:nhid] ("a1"), a[:, 1, :] of a[nhid:]
        a = jax.random.normal(k2, (nheads, 2, nhid), jnp.float32) * 0.1
        params["layers"].append({"W": w, "a": a})
        in_dim = nhid * nheads
    key, k1, k2 = jax.random.split(key, 3)
    # PyTorch nn.Linear stores (out, in); kept pre-transposed as (in, out) here.
    params["lin_w"] = jax.random.normal(k1, (in_dim, nclass), jnp.float32) * 0.1
    params["lin_b"] = jax.random.normal(k2, (1, nclass), jnp.float32) * 0.1
    return params


def _reference_forward(params, x, adj, alpha):
    """Pure-JAX f32 reference matching the PyTorch module in eval mode."""
    h = x
    for layer in params["layers"]:
        W, a = layer["W"], layer["a"]
        outs = []
        for hd in range(W.shape[0]):
            wh = h @ W[hd]
            f1 = wh @ a[hd, 0][:, None]
            f2 = wh @ a[hd, 1][:, None]
            e = f1 + f2.T
            e = jnp.where(e > 0, e, alpha * e)
            e = jnp.where(adj > 0, e, -9e15)
            attn = jax.nn.softmax(e, axis=-1)
            agg = attn @ wh
            outs.append(jnp.where(agg > 0, agg, jnp.exp(agg) - 1.0))
        h = jnp.concatenate(outs, axis=-1)
    return h @ params["lin_w"] + params["lin_b"]


# TODO(synk): Order2/Order1/MLPGraphAttentionLayer variants (att_type != None)
# are not defined in the reference source; only the canonical GAT layer is
# implemented here.

# ---------------------------------------------------------------------------
if __name__ == "__main__":
    N = 16          # nodes
    NFEAT = 8
    NCLASS = 4
    NHEADS = [2, 2]
    NHID = [8, 8]
    ALPHA = 0.2

    key = jax.random.PRNGKey(0)
    kx, kadj, kp = jax.random.split(key, 3)

    x = jax.random.normal(kx, (N, NFEAT), jnp.float32)
    # dense 0/1 adjacency with self loops (guards against all-masked softmax rows)
    adj = (jax.random.uniform(kadj, (N, N)) > 0.5).astype(jnp.float32)
    adj = jnp.maximum(adj, jnp.eye(N, dtype=jnp.float32))

    params = init_params(kp, NFEAT, NCLASS, NHEADS, NHID)
    prepped = prepare_params(params)   # one-time weight layout/bf16 prep, out of the hot path

    out = fully_connected_gat_forward(prepped, x, adj, alpha=ALPHA, nclass=NCLASS)
    out = jax.block_until_ready(out)
    assert out.shape == (N, NCLASS), out.shape
    assert bool(jnp.all(jnp.isfinite(out)))

    # loose tolerance: bf16 matmuls + approx reciprocal in the kernel vs f32 ref
    ref = _reference_forward(params, x, adj, ALPHA)
    err = float(jnp.max(jnp.abs(out - ref)))
    assert err < 2e-2, err

    print("KERNEL_OK")
</pallas_src>

<mosaic_0001>
module attributes {stable_mosaic.version = 11 : i64} {
  func.func @_fused_gat_kernel(%arg0: memref<16x16xi8, #tpu.memory_space<vmem>>, %arg1: memref<16x8xbf16, #tpu.memory_space<vmem>>, %arg2: memref<1x8x16xbf16, #tpu.memory_space<vmem>>, %arg3: memref<16x4xbf16, #tpu.memory_space<vmem>>, %arg4: memref<2x8x16xbf16, #tpu.memory_space<vmem>>, %arg5: memref<16x4xbf16, #tpu.memory_space<vmem>>, %arg6: memref<2x8x128xbf16, #tpu.memory_space<vmem>>, %arg7: memref<1x128xf32, #tpu.memory_space<vmem>>, %arg8: memref<16x128xf32, #tpu.memory_space<vmem>>) attributes {dimension_semantics = [], scalar_prefetch = 0 : i64, scratch_operands = 0 : i64, tpu.core_type = #tpu.core_type<tc>} {
    %c0 = arith.constant 0 : index
    %c0_0 = arith.constant 0 : index
    %0 = vector.load %arg0[%c0, %c0_0] : memref<16x16xi8, #tpu.memory_space<vmem>>, vector<16x16xi8>
    %1 = arith.sitofp %0 : vector<16x16xi8> to vector<16x16xf32>
    %cst = arith.constant 0.000000e+00 : f32
    %2 = vector.broadcast %cst : f32 to vector<16x16xf32>
    %3 = arith.cmpf ogt, %1, %2 : vector<16x16xf32>
    %c0_1 = arith.constant 0 : index
    %c0_2 = arith.constant 0 : index
    %4 = vector.load %arg1[%c0_1, %c0_2] : memref<16x8xbf16, #tpu.memory_space<vmem>>, vector<16x8xbf16>
    %c0_3 = arith.constant 0 : index
    %c0_4 = arith.constant 0 : index
    %c0_5 = arith.constant 0 : index
    %5 = vector.load %arg2[%c0_3, %c0_4, %c0_5] : memref<1x8x16xbf16, #tpu.memory_space<vmem>>, vector<1x8x16xbf16>
    %6 = vector.shape_cast %5 : vector<1x8x16xbf16> to vector<8x16xbf16>
    %cst_6 = arith.constant dense<0.000000e+00> : vector<16x16xf32>
    %7 = tpu.matmul %4, %6, %cst_6 {dimension_numbers = #tpu.dot_dimension_numbers<[1], [0], [0], [1], [0, 0, 1, 1], [], []>} : vector<16x8xbf16>, vector<8x16xbf16>, vector<16x16xf32> -> vector<16x16xf32>
    %8 = arith.truncf %7 : vector<16x16xf32> to vector<16x16xbf16>
    %c0_7 = arith.constant 0 : index
    %c0_8 = arith.constant 0 : index
    %9 = vector.load %arg3[%c0_7, %c0_8] : memref<16x4xbf16, #tpu.memory_space<vmem>>, vector<16x4xbf16>
    %cst_9 = arith.constant dense<0.000000e+00> : vector<16x4xf32>
    %10 = tpu.matmul %8, %9, %cst_9 {dimension_numbers = #tpu.dot_dimension_numbers<[1], [0], [0], [1], [0, 0, 1, 1], [], []>} : vector<16x16xbf16>, vector<16x4xbf16>, vector<16x4xf32> -> vector<16x4xf32>
    %11 = tpu.transpose %10, [1, 0] : vector<16x4xf32> -> vector<4x16xf32>
    %12 = vector.extract_strided_slice %10 {offsets = [0, 0], sizes = [16, 1], strides = [1, 1]} : vector<16x4xf32> to vector<16x1xf32>
    %13 = vector.extract_strided_slice %11 {offsets = [2, 0], sizes = [1, 16], strides = [1, 1]} : vector<4x16xf32> to vector<1x16xf32>
    %14 = vector.broadcast %12 : vector<16x1xf32> to vector<16x16xf32>
    %15 = vector.broadcast %13 : vector<1x16xf32> to vector<16x16xf32>
    %16 = arith.addf %14, %15 : vector<16x16xf32>
    %cst_10 = arith.constant 0.000000e+00 : f32
    %17 = vector.broadcast %cst_10 : f32 to vector<16x16xf32>
    %18 = arith.cmpf ogt, %16, %17 : vector<16x16xf32>
    %cst_11 = arith.constant 2.000000e-01 : f32
    %19 = vector.broadcast %cst_11 : f32 to vector<16x16xf32>
    %20 = arith.mulf %19, %16 : vector<16x16xf32>
    %21 = arith.select %18, %16, %20 : vector<16x16xi1>, vector<16x16xf32>
    %cst_12 = arith.constant -9.000000e+15 : f32
    %22 = vector.broadcast %cst_12 : f32 to vector<16x16xf32>
    %23 = arith.select %3, %21, %22 : vector<16x16xi1>, vector<16x16xf32>
    %cst_13 = arith.constant dense<0xFF800000> : vector<16xf32>
    %24 = vector.multi_reduction <maximumf>, %23, %cst_13 [1] : vector<16x16xf32> to vector<16xf32>
    %25 = vector.shape_cast %24 : vector<16xf32> to vector<16x1xf32>
    %26 = vector.broadcast %25 : vector<16x1xf32> to vector<16x16xf32>
    %27 = arith.subf %23, %26 : vector<16x16xf32>
    %28 = math.exp %27 : vector<16x16xf32>
    %cst_14 = arith.constant dense<0.000000e+00> : vector<16xf32>
    %29 = vector.multi_reduction <add>, %28, %cst_14 [1] : vector<16x16xf32> to vector<16xf32>
    %30 = vector.shape_cast %29 : vector<16xf32> to vector<16x1xf32>
    %31 = tpu.reciprocal %30 {approx = true} : vector<16x1xf32> -> vector<16x1xf32>
    %32 = vector.broadcast %31 : vector<16x1xf32> to vector<16x16xf32>
    %33 = arith.mulf %28, %32 : vector<16x16xf32>
    %34 = arith.truncf %33 : vector<16x16xf32> to vector<16x16xbf16>
    %35 = vector.extract_strided_slice %8 {offsets = [0, 0], sizes = [16, 8], strides = [1, 1]} : vector<16x16xbf16> to vector<16x8xbf16>
    %cst_15 = arith.constant dense<0.000000e+00> : vector<16x8xf32>
    %36 = tpu.matmul %34, %35, %cst_15 {dimension_numbers = #tpu.dot_dimension_numbers<[1], [0], [0], [1], [0, 0, 1, 1], [], []>} : vector<16x16xbf16>, vector<16x8xbf16>, vector<16x8xf32> -> vector<16x8xf32>
    %cst_16 = arith.constant 0.000000e+00 : f32
    %37 = vector.broadcast %cst_16 : f32 to vector<16x8xf32>
    %38 = arith.cmpf ogt, %36, %37 : vector<16x8xf32>
    %39 = math.exp %36 : vector<16x8xf32>
    %cst_17 = arith.constant 1.000000e+00 : f32
    %40 = vector.broadcast %cst_17 : f32 to vector<16x8xf32>
    %41 = arith.subf %39, %40 : vector<16x8xf32>
    %42 = arith.select %38, %36, %41 : vector<16x8xi1>, vector<16x8xf32>
    %43 = arith.truncf %42 : vector<16x8xf32> to vector<16x8xbf16>
    %44 = vector.extract_strided_slice %10 {offsets = [0, 1], sizes = [16, 1], strides = [1, 1]} : vector<16x4xf32> to vector<16x1xf32>
    %45 = vector.extract_strided_slice %11 {offsets = [3, 0], sizes = [1, 16], strides = [1, 1]} : vector<4x16xf32> to vector<1x16xf32>
    %46 = vector.broadcast %44 : vector<16x1xf32> to vector<16x16xf32>
    %47 = vector.broadcast %45 : vector<1x16xf32> to vector<16x16xf32>
    %48 = arith.addf %46, %47 : vector<16x16xf32>
    %cst_18 = arith.constant 0.000000e+00 : f32
    %49 = vector.broadcast %cst_18 : f32 to vector<16x16xf32>
    %50 = arith.cmpf ogt, %48, %49 : vector<16x16xf32>
    %cst_19 = arith.constant 2.000000e-01 : f32
    %51 = vector.broadcast %cst_19 : f32 to vector<16x16xf32>
    %52 = arith.mulf %51, %48 : vector<16x16xf32>
    %53 = arith.select %50, %48, %52 : vector<16x16xi1>, vector<16x16xf32>
    %cst_20 = arith.constant -9.000000e+15 : f32
    %54 = vector.broadcast %cst_20 : f32 to vector<16x16xf32>
    %55 = arith.select %3, %53, %54 : vector<16x16xi1>, vector<16x16xf32>
    %cst_21 = arith.constant dense<0xFF800000> : vector<16xf32>
    %56 = vector.multi_reduction <maximumf>, %55, %cst_21 [1] : vector<16x16xf32> to vector<16xf32>
    %57 = vector.shape_cast %56 : vector<16xf32> to vector<16x1xf32>
    %58 = vector.broadcast %57 : vector<16x1xf32> to vector<16x16xf32>
    %59 = arith.subf %55, %58 : vector<16x16xf32>
    %60 = math.exp %59 : vector<16x16xf32>
    %cst_22 = arith.constant dense<0.000000e+00> : vector<16xf32>
    %61 = vector.multi_reduction <add>, %60, %cst_22 [1] : vector<16x16xf32> to vector<16xf32>
    %62 = vector.shape_cast %61 : vector<16xf32> to vector<16x1xf32>
    %63 = tpu.reciprocal %62 {approx = true} : vector<16x1xf32> -> vector<16x1xf32>
    %64 = vector.broadcast %63 : vector<16x1xf32> to vector<16x16xf32>
    %65 = arith.mulf %60, %64 : vector<16x16xf32>
    %66 = arith.truncf %65 : vector<16x16xf32> to vector<16x16xbf16>
    %67 = vector.extract_strided_slice %8 {offsets = [0, 8], sizes = [16, 8], strides = [1, 1]} : vector<16x16xbf16> to vector<16x8xbf16>
    %cst_23 = arith.constant dense<0.000000e+00> : vector<16x8xf32>
    %68 = tpu.matmul %66, %67, %cst_23 {dimension_numbers = #tpu.dot_dimension_numbers<[1], [0], [0], [1], [0, 0, 1, 1], [], []>} : vector<16x16xbf16>, vector<16x8xbf16>, vector<16x8xf32> -> vector<16x8xf32>
    %cst_24 = arith.constant 0.000000e+00 : f32
    %69 = vector.broadcast %cst_24 : f32 to vector<16x8xf32>
    %70 = arith.cmpf ogt, %68, %69 : vector<16x8xf32>
    %71 = math.exp %68 : vector<16x8xf32>
    %cst_25 = arith.constant 1.000000e+00 : f32
    %72 = vector.broadcast %cst_25 : f32 to vector<16x8xf32>
    %73 = arith.subf %71, %72 : vector<16x8xf32>
    %74 = arith.select %70, %68, %73 : vector<16x8xi1>, vector<16x8xf32>
    %75 = arith.truncf %74 : vector<16x8xf32> to vector<16x8xbf16>
    %c0_26 = arith.constant 0 : index
    %c0_27 = arith.constant 0 : index
    %c0_28 = arith.constant 0 : index
    %76 = vector.load %arg4[%c0_26, %c0_27, %c0_28] : memref<2x8x16xbf16, #tpu.memory_space<vmem>>, vector<1x8x16xbf16>
    %77 = vector.shape_cast %76 : vector<1x8x16xbf16> to vector<8x16xbf16>
    %cst_29 = arith.constant dense<0.000000e+00> : vector<16x16xf32>
    %78 = tpu.matmul %43, %77, %cst_29 {dimension_numbers = #tpu.dot_dimension_numbers<[1], [0], [0], [1], [0, 0, 1, 1], [], []>} : vector<16x8xbf16>, vector<8x16xbf16>, vector<16x16xf32> -> vector<16x16xf32>
    %c1 = arith.constant 1 : index
    %c0_30 = arith.constant 0 : index
    %c0_31 = arith.constant 0 : index
    %79 = vector.load %arg4[%c1, %c0_30, %c0_31] : memref<2x8x16xbf16, #tpu.memory_space<vmem>>, vector<1x8x16xbf16>
    %80 = vector.shape_cast %79 : vector<1x8x16xbf16> to vector<8x16xbf16>
    %cst_32 = arith.constant dense<0.000000e+00> : vector<16x16xf32>
    %81 = tpu.matmul %75, %80, %cst_32 {dimension_numbers = #tpu.dot_dimension_numbers<[1], [0], [0], [1], [0, 0, 1, 1], [], []>} : vector<16x8xbf16>, vector<8x16xbf16>, vector<16x16xf32> -> vector<16x16xf32>
    %82 = arith.addf %78, %81 : vector<16x16xf32>
    %83 = arith.truncf %82 : vector<16x16xf32> to vector<16x16xbf16>
    %c0_33 = arith.constant 0 : index
    %c0_34 = arith.constant 0 : index
    %84 = vector.load %arg5[%c0_33, %c0_34] : memref<16x4xbf16, #tpu.memory_space<vmem>>, vector<16x4xbf16>
    %cst_35 = arith.constant dense<0.000000e+00> : vector<16x4xf32>
    %85 = tpu.matmul %83, %84, %cst_35 {dimension_numbers = #tpu.dot_dimension_numbers<[1], [0], [0], [1], [0, 0, 1, 1], [], []>} : vector<16x16xbf16>, vector<16x4xbf16>, vector<16x4xf32> -> vector<16x4xf32>
    %86 = tpu.transpose %85, [1, 0] : vector<16x4xf32> -> vector<4x16xf32>
    %87 = vector.extract_strided_slice %85 {offsets = [0, 0], sizes = [16, 1], strides = [1, 1]} : vector<16x4xf32> to vector<16x1xf32>
    %88 = vector.extract_strided_slice %86 {offsets = [2, 0], sizes = [1, 16], strides = [1, 1]} : vector<4x16xf32> to vector<1x16xf32>
    %89 = vector.broadcast %87 : vector<16x1xf32> to vector<16x16xf32>
    %90 = vector.broadcast %88 : vector<1x16xf32> to vector<16x16xf32>
    %91 = arith.addf %89, %90 : vector<16x16xf32>
    %cst_36 = arith.constant 0.000000e+00 : f32
    %92 = vector.broadcast %cst_36 : f32 to vector<16x16xf32>
    %93 = arith.cmpf ogt, %91, %92 : vector<16x16xf32>
    %cst_37 = arith.constant 2.000000e-01 : f32
    %94 = vector.broadcast %cst_37 : f32 to vector<16x16xf32>
    %95 = arith.mulf %94, %91 : vector<16x16xf32>
    %96 = arith.select %93, %91, %95 : vector<16x16xi1>, vector<16x16xf32>
    %cst_38 = arith.constant -9.000000e+15 : f32
    %97 = vector.broadcast %cst_38 : f32 to vector<16x16xf32>
    %98 = arith.select %3, %96, %97 : vector<16x16xi1>, vector<16x16xf32>
    %cst_39 = arith.constant dense<0xFF800000> : vector<16xf32>
    %99 = vector.multi_reduction <maximumf>, %98, %cst_39 [1] : vector<16x16xf32> to vector<16xf32>
    %100 = vector.shape_cast %99 : vector<16xf32> to vector<16x1xf32>
    %101 = vector.broadcast %100 : vector<16x1xf32> to vector<16x16xf32>
    %102 = arith.subf %98, %101 : vector<16x16xf32>
    %103 = math.exp %102 : vector<16x16xf32>
    %cst_40 = arith.constant dense<0.000000e+00> : vector<16xf32>
    %104 = vector.multi_reduction <add>, %103, %cst_40 [1] : vector<16x16xf32> to vector<16xf32>
    %105 = vector.shape_cast %104 : vector<16xf32> to vector<16x1xf32>
    %106 = tpu.reciprocal %105 {approx = true} : vector<16x1xf32> -> vector<16x1xf32>
    %107 = vector.broadcast %106 : vector<16x1xf32> to vector<16x16xf32>
    %108 = arith.mulf %103, %107 : vector<16x16xf32>
    %109 = arith.truncf %108 : vector<16x16xf32> to vector<16x16xbf16>
    %110 = vector.extract_strided_slice %83 {offsets = [0, 0], sizes = [16, 8], strides = [1, 1]} : vector<16x16xbf16> to vector<16x8xbf16>
    %cst_41 = arith.constant dense<0.000000e+00> : vector<16x8xf32>
    %111 = tpu.matmul %109, %110, %cst_41 {dimension_numbers = #tpu.dot_dimension_numbers<[1], [0], [0], [1], [0, 0, 1, 1], [], []>} : vector<16x16xbf16>, vector<16x8xbf16>, vector<16x8xf32> -> vector<16x8xf32>
    %cst_42 = arith.constant 0.000000e+00 : f32
    %112 = vector.broadcast %cst_42 : f32 to vector<16x8xf32>
    %113 = arith.cmpf ogt, %111, %112 : vector<16x8xf32>
    %114 = math.exp %111 : vector<16x8xf32>
    %cst_43 = arith.constant 1.000000e+00 : f32
    %115 = vector.broadcast %cst_43 : f32 to vector<16x8xf32>
    %116 = arith.subf %114, %115 : vector<16x8xf32>
    %117 = arith.select %113, %111, %116 : vector<16x8xi1>, vector<16x8xf32>
    %118 = arith.truncf %117 : vector<16x8xf32> to vector<16x8xbf16>
    %119 = vector.extract_strided_slice %85 {offsets = [0, 1], sizes = [16, 1], strides = [1, 1]} : vector<16x4xf32> to vector<16x1xf32>
    %120 = vector.extract_strided_slice %86 {offsets = [3, 0], sizes = [1, 16], strides = [1, 1]} : vector<4x16xf32> to vector<1x16xf32>
    %121 = vector.broadcast %119 : vector<16x1xf32> to vector<16x16xf32>
    %122 = vector.broadcast %120 : vector<1x16xf32> to vector<16x16xf32>
    %123 = arith.addf %121, %122 : vector<16x16xf32>
    %cst_44 = arith.constant 0.000000e+00 : f32
    %124 = vector.broadcast %cst_44 : f32 to vector<16x16xf32>
    %125 = arith.cmpf ogt, %123, %124 : vector<16x16xf32>
    %cst_45 = arith.constant 2.000000e-01 : f32
    %126 = vector.broadcast %cst_45 : f32 to vector<16x16xf32>
    %127 = arith.mulf %126, %123 : vector<16x16xf32>
    %128 = arith.select %125, %123, %127 : vector<16x16xi1>, vector<16x16xf32>
    %cst_46 = arith.constant -9.000000e+15 : f32
    %129 = vector.broadcast %cst_46 : f32 to vector<16x16xf32>
    %130 = arith.select %3, %128, %129 : vector<16x16xi1>, vector<16x16xf32>
    %cst_47 = arith.constant dense<0xFF800000> : vector<16xf32>
    %131 = vector.multi_reduction <maximumf>, %130, %cst_47 [1] : vector<16x16xf32> to vector<16xf32>
    %132 = vector.shape_cast %131 : vector<16xf32> to vector<16x1xf32>
    %133 = vector.broadcast %132 : vector<16x1xf32> to vector<16x16xf32>
    %134 = arith.subf %130, %133 : vector<16x16xf32>
    %135 = math.exp %134 : vector<16x16xf32>
    %cst_48 = arith.constant dense<0.000000e+00> : vector<16xf32>
    %136 = vector.multi_reduction <add>, %135, %cst_48 [1] : vector<16x16xf32> to vector<16xf32>
    %137 = vector.shape_cast %136 : vector<16xf32> to vector<16x1xf32>
    %138 = tpu.reciprocal %137 {approx = true} : vector<16x1xf32> -> vector<16x1xf32>
    %139 = vector.broadcast %138 : vector<16x1xf32> to vector<16x16xf32>
    %140 = arith.mulf %135, %139 : vector<16x16xf32>
    %141 = arith.truncf %140 : vector<16x16xf32> to vector<16x16xbf16>
    %142 = vector.extract_strided_slice %83 {offsets = [0, 8], sizes = [16, 8], strides = [1, 1]} : vector<16x16xbf16> to vector<16x8xbf16>
    %cst_49 = arith.constant dense<0.000000e+00> : vector<16x8xf32>
    %143 = tpu.matmul %141, %142, %cst_49 {dimension_numbers = #tpu.dot_dimension_numbers<[1], [0], [0], [1], [0, 0, 1, 1], [], []>} : vector<16x16xbf16>, vector<16x8xbf16>, vector<16x8xf32> -> vector<16x8xf32>
    %cst_50 = arith.constant 0.000000e+00 : f32
    %144 = vector.broadcast %cst_50 : f32 to vector<16x8xf32>
    %145 = arith.cmpf ogt, %143, %144 : vector<16x8xf32>
    %146 = math.exp %143 : vector<16x8xf32>
    %cst_51 = arith.constant 1.000000e+00 : f32
    %147 = vector.broadcast %cst_51 : f32 to vector<16x8xf32>
    %148 = arith.subf %146, %147 : vector<16x8xf32>
    %149 = arith.select %145, %143, %148 : vector<16x8xi1>, vector<16x8xf32>
    %150 = arith.truncf %149 : vector<16x8xf32> to vector<16x8xbf16>
    %c0_52 = arith.constant 0 : index
    %c0_53 = arith.constant 0 : index
    %c0_54 = arith.constant 0 : index
    %151 = vector.load %arg6[%c0_52, %c0_53, %c0_54] : memref<2x8x128xbf16, #tpu.memory_space<vmem>>, vector<1x8x128xbf16>
    %152 = vector.shape_cast %151 : vector<1x8x128xbf16> to vector<8x128xbf16>
    %cst_55 = arith.constant dense<0.000000e+00> : vector<16x128xf32>
    %153 = tpu.matmul %118, %152, %cst_55 {dimension_numbers = #tpu.dot_dimension_numbers<[1], [0], [0], [1], [0, 0, 1, 1], [], []>} : vector<16x8xbf16>, vector<8x128xbf16>, vector<16x128xf32> -> vector<16x128xf32>
    %c1_56 = arith.constant 1 : index
    %c0_57 = arith.constant 0 : index
    %c0_58 = arith.constant 0 : index
    %154 = vector.load %arg6[%c1_56, %c0_57, %c0_58] : memref<2x8x128xbf16, #tpu.memory_space<vmem>>, vector<1x8x128xbf16>
    %155 = vector.shape_cast %154 : vector<1x8x128xbf16> to vector<8x128xbf16>
    %cst_59 = arith.constant dense<0.000000e+00> : vector<16x128xf32>
    %156 = tpu.matmul %150, %155, %cst_59 {dimension_numbers = #tpu.dot_dimension_numbers<[1], [0], [0], [1], [0, 0, 1, 1], [], []>} : vector<16x8xbf16>, vector<8x128xbf16>, vector<16x128xf32> -> vector<16x128xf32>
    %157 = arith.addf %153, %156 : vector<16x128xf32>
    %c0_60 = arith.constant 0 : index
    %c0_61 = arith.constant 0 : index
    %158 = vector.load %arg7[%c0_60, %c0_61] : memref<1x128xf32, #tpu.memory_space<vmem>>, vector<1x128xf32>
    %159 = vector.broadcast %158 : vector<1x128xf32> to vector<16x128xf32>
    %160 = arith.addf %157, %159 : vector<16x128xf32>
    %c0_62 = arith.constant 0 : index
    %c0_63 = arith.constant 0 : index
    %161 = vector.load %arg8[%c0_62, %c0_63] : memref<16x128xf32, #tpu.memory_space<vmem>>, vector<16x128xf32>
    tpu.vector_store %arg8[%c0_62, %c0_63], %160 {strides = array<i32>} : memref<16x128xf32, #tpu.memory_space<vmem>>, vector<16x128xf32>,
    return
  }
}

</mosaic_0001>

<llo_original>
// kernel: fully_connected_gat_forward.1
$region0: #{fully_connected_gat_forward.1}
  #allocation0 [shape = 'u32[]', space=smem, size = 0x4, offset = 0x4, fixed_abs, tag = 'smem constant byte address 0x4 - core index']
  #allocation1 [shape = 'u32[144,128]{1,0:T(1,128)}', space=vmem, size = 0x12000, scoped, tag = 'internal scratch']
  %s0 = inlined_call_operand.vmem [shape: s8[16,16], index: 0, kind: input, shape index: {}]
  %s1 = inlined_call_operand.vmem [shape: bf16[16,8], index: 1, kind: input, shape index: {}]
  %s2 = inlined_call_operand.vmem [shape: bf16[1,8,16], index: 2, kind: input, shape index: {}]
  %s3 = inlined_call_operand.vmem [shape: bf16[16,4], index: 3, kind: input, shape index: {}]
  %s4 = inlined_call_operand.vmem [shape: bf16[2,8,16], index: 4, kind: input, shape index: {}]
  %s5 = inlined_call_operand.vmem [shape: bf16[16,4], index: 5, kind: input, shape index: {}]
  %s6 = inlined_call_operand.vmem [shape: bf16[2,8,128], index: 6, kind: input, shape index: {}]
  %s7 = inlined_call_operand.vmem [shape: f32[1,128], index: 7, kind: input, shape index: {}]
  %s8 = inlined_call_operand.vmem [shape: f32[16,128], index: 8, kind: output, shape index: {}]
  %s9 = sld [smem:[#allocation0]]
  $region42: #{fully_connected_gat_forward.1} parent=0
    _
  %s11 = ssub.s32 1, %s9
  %s12 = scalar_select 0, %s11, %s9
  // Predicated region
  $region2: #{fully_connected_gat_forward.1} parent=0 // pred_check
    _
  $region3: #{fully_connected_gat_forward.1} parent=0 // pred_check_branch
    %14 = sbr.rel (0) target = $region5
  $region4: #{fully_connected_gat_forward.1} parent=0 // pred_region
    _
  $region5: #{fully_connected_gat_forward.1} parent=0 // pred_fallthru
    _
  // Predicated region
  $region6: #{fully_connected_gat_forward.1} parent=0 // pred_check
    _
  $region7: #{fully_connected_gat_forward.1} parent=0 // pred_check_branch
    %16 = sbr.rel (0) target = $region9
  $region8: #{fully_connected_gat_forward.1} parent=0 // pred_region
    _
  $region9: #{fully_connected_gat_forward.1} parent=0 // pred_fallthru
    _
  // Predicated region
  $region10: #{fully_connected_gat_forward.1} parent=0 // pred_check
    _
  $region11: #{fully_connected_gat_forward.1} parent=0 // pred_check_branch
    %18 = sbr.rel (0) target = $region13
  $region12: #{fully_connected_gat_forward.1} parent=0 // pred_region
    _
  $region13: #{fully_connected_gat_forward.1} parent=0 // pred_fallthru
    _
  // Predicated region
  $region14: #{fully_connected_gat_forward.1} parent=0 // pred_check
    _
  $region15: #{fully_connected_gat_forward.1} parent=0 // pred_check_branch
    %20 = sbr.rel (0) target = $region17
  $region16: #{fully_connected_gat_forward.1} parent=0 // pred_region
    _
  $region17: #{fully_connected_gat_forward.1} parent=0 // pred_fallthru
    _
  // Predicated region
  $region18: #{fully_connected_gat_forward.1} parent=0 // pred_check
    _
  $region19: #{fully_connected_gat_forward.1} parent=0 // pred_check_branch
    %22 = sbr.rel (0) target = $region21
  $region20: #{fully_connected_gat_forward.1} parent=0 // pred_region
    _
  $region21: #{fully_connected_gat_forward.1} parent=0 // pred_fallthru
    _
  // Predicated region
  $region22: #{fully_connected_gat_forward.1} parent=0 // pred_check
    _
  $region23: #{fully_connected_gat_forward.1} parent=0 // pred_check_branch
    %24 = sbr.rel (0) target = $region25
  $region24: #{fully_connected_gat_forward.1} parent=0 // pred_region
    _
  $region25: #{fully_connected_gat_forward.1} parent=0 // pred_fallthru
    _
  // Predicated region
  $region26: #{fully_connected_gat_forward.1} parent=0 // pred_check
    _
  $region27: #{fully_connected_gat_forward.1} parent=0 // pred_check_branch
    %26 = sbr.rel (0) target = $region29
  $region28: #{fully_connected_gat_forward.1} parent=0 // pred_region
    _
  $region29: #{fully_connected_gat_forward.1} parent=0 // pred_fallthru
    _
  // Predicated region
  $region30: #{fully_connected_gat_forward.1} parent=0 // pred_check
    _
  $region31: #{fully_connected_gat_forward.1} parent=0 // pred_check_branch
    %28 = sbr.rel (0) target = $region33
  $region32: #{fully_connected_gat_forward.1} parent=0 // pred_region
    _
  $region33: #{fully_connected_gat_forward.1} parent=0 // pred_fallthru
    _
  %v30 = vld [vmem:[%s0] sm:$0x3]
  %v31 = vld [vmem:[%s0 + $0x2] sm:$0x3]
  %v32 = vunpack.c.0.s8 %v30
  %v33 = vunpack.c.0.s8 %v31
  %v34 = vcvt.s32.f32 %v32
  %v35 = vcvt.s32.f32 %v33
  %vm36 = vcmp.gt.f32.partialorder %v34, 0.0
  %vm37 = vcmp.gt.f32.partialorder %v35, 0.0
  %v38 = vld [vmem:[%s1] sm:$0xf]
  %v39 = vld [vmem:[%s1 + $0x4] sm:$0xf]
  %v40 = vld [vmem:[%s2] sm:$0xf]
  %v43 = vunpack.c.l.b16 %v38
  %v44 = vunpack.c.l.b16 %v39
  %v45 = vpack.c.b16 %v44, %v43
  %vm46 = vcmask 64512
  %v48 = vsel %vm46, %v45, 0
  %vm50 = vcmask 1043456
  %v52 = vsel %vm50, %v40, 0
  %54 = vmatprep.subr.bf16.mxu0 0
  %55 = vmatpush1.bf16.msra.mxu0 0
  %56 = vmatprep.subr.bf16.mxu0 0
  %57 = vmatpush1.bf16.msra.mxu0 0
  %58 = vmatprep.subr.bf16.mxu0 0
  %59 = vmatpush1.bf16.msra.mxu0 0
  %60 = vmatprep.subr.bf16.mxu0 0
  %61 = vmatpush1.bf16.msra.mxu0 0
  %62 = vmatprep.subr.bf16.mxu0 0
  %63 = vmatpush1.bf16.msra.mxu0 0
  %64 = vmatprep.subr.bf16.mxu0 0
  %65 = vmatpush1.bf16.msra.mxu0 0
  %66 = vmatprep.subr.bf16.mxu0 0
  %67 = vmatpush1.bf16.msra.mxu0 0
  %68 = vmatprep.subr.bf16.mxu0 0
  %69 = vmatpush1.bf16.msra.mxu0 %v52
  %70 = vmatprep.subr.bf16.mxu0 0
  %71 = vmatpush2.bf16.msra.mxu0 0
  %72 = vmatprep.subr.bf16.mxu0 0
  %73 = vmatpush2.bf16.msra.mxu0 0
  %74 = vmatprep.subr.bf16.mxu0 0
  %75 = vmatpush2.bf16.msra.mxu0 0
  %76 = vmatprep.subr.bf16.mxu0 0
  %77 = vmatpush2.bf16.msra.mxu0 0
  %78 = vmatprep.subr.bf16.mxu0 0
  %79 = vmatpush2.bf16.msra.mxu0 0
  %80 = vmatprep.subr.bf16.mxu0 0
  %81 = vmatpush2.bf16.msra.mxu0 0
  %82 = vmatprep.subr.bf16.mxu0 0
  %83 = vmatpush2.bf16.msra.mxu0 0
  %84 = vmatprep.subr.bf16.mxu0 0
  %85 = vmatpush2.bf16.msra.mxu0 0
  %86 = vmatprep.mubr.bf16.mxu0 0
  %87 = vmatmul.mubr.bf16.gmra.mxu0 %v48
  %v88 = vpop.f32.mrf.mxu0
  %v89 = vadd.f32 0.0, %v88
  %v90 = vpop.f32.mrf.mxu0
  %v91 = vpop.f32.mrf.mxu0
  %v92 = vadd.f32 0.0, %v91
  %v93 = vpop.f32.mrf.mxu0
  %94 = vdwg.mxu0
  %v95 = vpack.c.bf16 %v92, %v89
  %v96 = vld [vmem:[%s3] sm:$0xf]
  %v97 = vld [vmem:[%s3 + $0x4] sm:$0xf]
  %v100 = vunpack.c.l.b16 %v96
  %v101 = vunpack.c.l.b16 %v97
  %v102 = vpack.c.b16 %v101, %v100
  %vm104 = vcmask 130048
  %v106 = vsel %vm104, %v95, 0
  %108 = vmatprep.subr.bf16.mxu0 0
  %109 = vmatpush1.bf16.msra.mxu0 0
  %110 = vmatprep.subr.bf16.mxu0 0
  %111 = vmatpush1.bf16.msra.mxu0 0
  %112 = vmatprep.subr.bf16.mxu0 0
  %113 = vmatpush1.bf16.msra.mxu0 0
  %114 = vmatprep.subr.bf16.mxu0 0
  %115 = vmatpush1.bf16.msra.mxu0 0
  %116 = vmatprep.subr.bf16.mxu0 0
  %117 = vmatpush1.bf16.msra.mxu0 0
  %118 = vmatprep.subr.bf16.mxu0 0
  %119 = vmatpush1.bf16.msra.mxu0 0
  %120 = vmatprep.subr.bf16.mxu0 0
  %121 = vmatpush1.bf16.msra.mxu0 0
  %122 = vmatprep.subr.bf16.mxu0 0
  %123 = vmatpush1.bf16.msra.mxu0 %v102
  %124 = vmatprep.subr.bf16.mxu0 0
  %125 = vmatpush2.bf16.msra.mxu0 0
  %126 = vmatprep.subr.bf16.mxu0 0
  %127 = vmatpush2.bf16.msra.mxu0 0
  %128 = vmatprep.subr.bf16.mxu0 0
  %129 = vmatpush2.bf16.msra.mxu0 0
  %130 = vmatprep.subr.bf16.mxu0 0
  %131 = vmatpush2.bf16.msra.mxu0 0
  %132 = vmatprep.subr.bf16.mxu0 0
  %133 = vmatpush2.bf16.msra.mxu0 0
  %134 = vmatprep.subr.bf16.mxu0 0
  %135 = vmatpush2.bf16.msra.mxu0 0
  %136 = vmatprep.subr.bf16.mxu0 0
  %137 = vmatpush2.bf16.msra.mxu0 0
  %138 = vmatprep.subr.bf16.mxu0 0
  %139 = vmatpush2.bf16.msra.mxu0 0
  %140 = vmatprep.mubr.bf16.mxu0 0
  %141 = vmatmul.mubr.bf16.gmra.mxu0 %v106
  %v142 = vpop.f32.mrf.mxu0
  %v143 = vadd.f32 0.0, %v142
  %v144 = vpop.f32.mrf.mxu0
  %v145 = vpop.f32.mrf.mxu0
  %v146 = vadd.f32 0.0, %v145
  %v147 = vpop.f32.mrf.mxu0
  %148 = vdwg.mxu0
  %149 = vxpose.xlu0.b32.start [1/16] %v143, 128
  %150 = vxpose.xlu0.b32.cont [2/16] %v146, 128
  %151 = vxpose.xlu0.b32.cont [3/16] 0.0, 128
  %152 = vxpose.xlu0.b32.cont [4/16] 0.0, 128
  %153 = vxpose.xlu0.b32.cont [5/16] 0.0, 128
  %154 = vxpose.xlu0.b32.cont [6/16] 0.0, 128
  %155 = vxpose.xlu0.b32.cont [7/16] 0.0, 128
  %156 = vxpose.xlu0.b32.cont [8/16] 0.0, 128
  %157 = vxpose.xlu0.b32.cont [9/16] 0.0, 128
  %158 = vxpose.xlu0.b32.cont [10/16] 0.0, 128
  %159 = vxpose.xlu0.b32.cont [11/16] 0.0, 128
  %160 = vxpose.xlu0.b32.cont [12/16] 0.0, 128
  %161 = vxpose.xlu0.b32.cont [13/16] 0.0, 128
  %162 = vxpose.xlu0.b32.cont [14/16] 0.0, 128
  %163 = vxpose.xlu0.b32.cont [15/16] 0.0, 128
  %164 = vxpose.xlu0.b32.end [16/16] 0.0, 128
  %v165 = vpop.trf.xlu0
  %v166 = vpop.trf.xlu0
  %v167 = vpop.trf.xlu0
  %v168 = vpop.trf.xlu0
  %v169 = vpop.trf.xlu0
  %v170 = vpop.trf.xlu0
  %v171 = vpop.trf.xlu0
  %v172 = vpop.trf.xlu0
  %v173 = vpop.trf.xlu0
  %v174 = vpop.trf.xlu0
  %v175 = vpop.trf.xlu0
  %v176 = vpop.trf.xlu0
  %v177 = vpop.trf.xlu0
  %v178 = vpop.trf.xlu0
  %v179 = vpop.trf.xlu0
  %v180 = vpop.trf.xlu0
  %182 = vset.pattern.permute.xlu0 0
  %183 = vperm.xlu0 %182, %v143
  %v184 = vpop.permute.xlu0 %183
  %187 = vset.pattern.permute.xlu0 0
  %188 = vperm.xlu0 %187, %v146
  %v189 = vpop.permute.xlu0 %188
  %v191 = vlaneseq
  %v192 = vshrl.u32 %v191, 7
  %v193 = vsub.s32 2, %v192
  %v194 = vrot.slane %v165, %v193
  %v195 = vadd.f32 %v184, %v194
  %v196 = vadd.f32 %v189, %v194
  %vm197 = vcmp.gt.f32.partialorder %v195, 0.0
  %vm198 = vcmp.gt.f32.partialorder %v196, 0.0
  %v199 = vmul.f32 %v195, 0.2
  %v200 = vmul.f32 %v196, 0.2
  %v201 = vsel %vm197, %v195, %v199
  %v202 = vsel %vm198, %v196, %v200
  %v203 = vsel %vm36, %v201, -9e+15
  %v204 = vsel %vm37, %v202, -9e+15
  %v205 = vsel %vm104, %v203, -inf
  %206 = vmax.xlane.f32.xlu0 %v205
  %v207 = vpop.xlane.xlu0 %206
  %v208 = vsel %vm104, %v204, -inf
  %209 = vmax.xlane.f32.xlu0 %v208
  %v210 = vpop.xlane.xlu0 %209
  %v211 = vsub.f32 %v203, %v207
  %v212 = vsub.f32 %v204, %v210
  %v213 = vmul.f32 %v211, 1.442695
  %v214 = vpow.pop %v213
  %v215 = vmul.f32 %v212, 1.442695
  %v216 = vpow.pop %v215
  %v217 = vsel %vm104, %v214, 0.0
  %218 = vadd.xlane.f32.xlu0 %v217
  %v219 = vpop.xlane.xlu0 %218
  %v220 = vsel %vm104, %v216, 0.0
  %221 = vadd.xlane.f32.xlu0 %v220
  %v222 = vpop.xlane.xlu0 %221
  %v223 = vrcp.pop %v219
  %v224 = vrcp.pop %v222
  %v225 = vmul.f32 %v214, %v223
  %v226 = vmul.f32 %v216, %v224
  %v227 = vpack.c.bf16 %v226, %v225
  %v229 = vsel %vm104, %v227, 0
  %231 = vmatprep.subr.bf16.mxu0 0
  %232 = vmatpush1.bf16.msra.mxu0 0
  %233 = vmatprep.subr.bf16.mxu0 0
  %234 = vmatpush1.bf16.msra.mxu0 0
  %235 = vmatprep.subr.bf16.mxu0 0
  %236 = vmatpush1.bf16.msra.mxu0 0
  %237 = vmatprep.subr.bf16.mxu0 0
  %238 = vmatpush1.bf16.msra.mxu0 0
  %239 = vmatprep.subr.bf16.mxu0 0
  %240 = vmatpush1.bf16.msra.mxu0 0
  %241 = vmatprep.subr.bf16.mxu0 0
  %242 = vmatpush1.bf16.msra.mxu0 0
  %243 = vmatprep.subr.bf16.mxu0 0
  %244 = vmatpush1.bf16.msra.mxu0 0
  %245 = vmatprep.subr.bf16.mxu0 0
  %246 = vmatpush1.bf16.msra.mxu0 %v95
  %247 = vmatprep.subr.bf16.mxu0 0
  %248 = vmatpush2.bf16.msra.mxu0 0
  %249 = vmatprep.subr.bf16.mxu0 0
  %250 = vmatpush2.bf16.msra.mxu0 0
  %251 = vmatprep.subr.bf16.mxu0 0
  %252 = vmatpush2.bf16.msra.mxu0 0
  %253 = vmatprep.subr.bf16.mxu0 0
  %254 = vmatpush2.bf16.msra.mxu0 0
  %255 = vmatprep.subr.bf16.mxu0 0
  %256 = vmatpush2.bf16.msra.mxu0 0
  %257 = vmatprep.subr.bf16.mxu0 0
  %258 = vmatpush2.bf16.msra.mxu0 0
  %259 = vmatprep.subr.bf16.mxu0 0
  %260 = vmatpush2.bf16.msra.mxu0 0
  %261 = vmatprep.subr.bf16.mxu0 0
  %262 = vmatpush2.bf16.msra.mxu0 0
  %263 = vmatprep.mubr.bf16.mxu0 0
  %264 = vmatmul.mubr.bf16.gmra.mxu0 %v229
  %v265 = vpop.f32.mrf.mxu0
  %v266 = vadd.f32 0.0, %v265
  %v267 = vpop.f32.mrf.mxu0
  %v268 = vpop.f32.mrf.mxu0
  %v269 = vadd.f32 0.0, %v268
  %v270 = vpop.f32.mrf.mxu0
  %271 = vdwg.mxu0
  %vm272 = vcmp.gt.f32.partialorder %v266, 0.0
  %vm273 = vcmp.gt.f32.partialorder %v269, 0.0
  %v274 = vmul.f32 %v266, 1.442695
  %v275 = vpow.pop %v274
  %v276 = vmul.f32 %v269, 1.442695
  %v277 = vpow.pop %v276
  %v278 = vsub.f32 %v275, 1.0
  %v279 = vsub.f32 %v277, 1.0
  %v280 = vsel %vm272, %v266, %v278
  %v281 = vsel %vm273, %v269, %v279
  %v282 = vpack.c.bf16 %v281, %v280
  %283 = vset.pattern.permute.xlu0 1
  %284 = vperm.xlu0 %283, %v143
  %v285 = vpop.permute.xlu0 %284
  %287 = vset.pattern.permute.xlu0 1
  %288 = vperm.xlu0 %287, %v146
  %v289 = vpop.permute.xlu0 %288
  %v291 = vlaneseq
  %v292 = vshrl.u32 %v291, 7
  %v293 = vsub.s32 3, %v292
  %v294 = vrot.slane %v165, %v293
  %v295 = vadd.f32 %v285, %v294
  %v296 = vadd.f32 %v289, %v294
  %vm297 = vcmp.gt.f32.partialorder %v295, 0.0
  %vm298 = vcmp.gt.f32.partialorder %v296, 0.0
  %v299 = vmul.f32 %v295, 0.2
  %v300 = vmul.f32 %v296, 0.2
  %v301 = vsel %vm297, %v295, %v299
  %v302 = vsel %vm298, %v296, %v300
  %v303 = vsel %vm36, %v301, -9e+15
  %v304 = vsel %vm37, %v302, -9e+15
  %v305 = vsel %vm104, %v303, -inf
  %306 = vmax.xlane.f32.xlu0 %v305
  %v307 = vpop.xlane.xlu0 %306
  %v308 = vsel %vm104, %v304, -inf
  %309 = vmax.xlane.f32.xlu0 %v308
  %v310 = vpop.xlane.xlu0 %309
  %v311 = vsub.f32 %v303, %v307
  %v312 = vsub.f32 %v304, %v310
  %v313 = vmul.f32 %v311, 1.442695
  %v314 = vpow.pop %v313
  %v315 = vmul.f32 %v312, 1.442695
  %v316 = vpow.pop %v315
  %v317 = vsel %vm104, %v314, 0.0
  %318 = vadd.xlane.f32.xlu0 %v317
  %v319 = vpop.xlane.xlu0 %318
  %v320 = vsel %vm104, %v316, 0.0
  %321 = vadd.xlane.f32.xlu0 %v320
  %v322 = vpop.xlane.xlu0 %321
  %v323 = vrcp.pop %v319
  %v324 = vrcp.pop %v322
  %v325 = vmul.f32 %v314, %v323
  %v326 = vmul.f32 %v316, %v324
  %v327 = vpack.c.bf16 %v326, %v325
  %329 = vrot.lane.b32.xlu0 %v95, 120
  %v330 = vpop.permute.xlu0 %329
  %v333 = vsel %vm104, %v327, 0
  %335 = vmatprep.subr.bf16.mxu0 0
  %336 = vmatpush1.bf16.msra.mxu0 0
  %337 = vmatprep.subr.bf16.mxu0 0
  %338 = vmatpush1.bf16.msra.mxu0 0
  %339 = vmatprep.subr.bf16.mxu0 0
  %340 = vmatpush1.bf16.msra.mxu0 0
  %341 = vmatprep.subr.bf16.mxu0 0
  %342 = vmatpush1.bf16.msra.mxu0 0
  %343 = vmatprep.subr.bf16.mxu0 0
  %344 = vmatpush1.bf16.msra.mxu0 0
  %345 = vmatprep.subr.bf16.mxu0 0
  %346 = vmatpush1.bf16.msra.mxu0 0
  %347 = vmatprep.subr.bf16.mxu0 0
  %348 = vmatpush1.bf16.msra.mxu0 0
  %349 = vmatprep.subr.bf16.mxu0 0
  %350 = vmatpush1.bf16.msra.mxu0 %v330
  %351 = vmatprep.subr.bf16.mxu0 0
  %352 = vmatpush2.bf16.msra.mxu0 0
  %353 = vmatprep.subr.bf16.mxu0 0
  %354 = vmatpush2.bf16.msra.mxu0 0
  %355 = vmatprep.subr.bf16.mxu0 0
  %356 = vmatpush2.bf16.msra.mxu0 0
  %357 = vmatprep.subr.bf16.mxu0 0
  %358 = vmatpush2.bf16.msra.mxu0 0
  %359 = vmatprep.subr.bf16.mxu0 0
  %360 = vmatpush2.bf16.msra.mxu0 0
  %361 = vmatprep.subr.bf16.mxu0 0
  %362 = vmatpush2.bf16.msra.mxu0 0
  %363 = vmatprep.subr.bf16.mxu0 0
  %364 = vmatpush2.bf16.msra.mxu0 0
  %365 = vmatprep.subr.bf16.mxu0 0
  %366 = vmatpush2.bf16.msra.mxu0 0
  %367 = vmatprep.mubr.bf16.mxu0 0
  %368 = vmatmul.mubr.bf16.gmra.mxu0 %v333
  %v369 = vpop.f32.mrf.mxu0
  %v370 = vadd.f32 0.0, %v369
  %v371 = vpop.f32.mrf.mxu0
  %v372 = vpop.f32.mrf.mxu0
  %v373 = vadd.f32 0.0, %v372
  %v374 = vpop.f32.mrf.mxu0
  %375 = vdwg.mxu0
  %vm376 = vcmp.gt.f32.partialorder %v370, 0.0
  %vm377 = vcmp.gt.f32.partialorder %v373, 0.0
  %v378 = vmul.f32 %v370, 1.442695
  %v379 = vpow.pop %v378
  %v380 = vmul.f32 %v373, 1.442695
  %v381 = vpow.pop %v380
  %v382 = vsub.f32 %v379, 1.0
  %v383 = vsub.f32 %v381, 1.0
  %v384 = vsel %vm376, %v370, %v382
  %v385 = vsel %vm377, %v373, %v383
  %v386 = vpack.c.bf16 %v385, %v384
  %v387 = vld [vmem:[%s4] sm:$0xf]
  %s388 = scalar_lea.vmem %s4, 4
  %v389 = vld [vmem:[%s388] sm:$0xf]
  %v391 = vsel %vm46, %v386, 0
  %v394 = vsel %vm50, %v389, 0
  %396 = vmatprep.subr.bf16.mxu0 0
  %397 = vmatpush1.bf16.msra.mxu0 0
  %398 = vmatprep.subr.bf16.mxu0 0
  %399 = vmatpush1.bf16.msra.mxu0 0
  %400 = vmatprep.subr.bf16.mxu0 0
  %401 = vmatpush1.bf16.msra.mxu0 0
  %402 = vmatprep.subr.bf16.mxu0 0
  %403 = vmatpush1.bf16.msra.mxu0 0
  %404 = vmatprep.subr.bf16.mxu0 0
  %405 = vmatpush1.bf16.msra.mxu0 0
  %406 = vmatprep.subr.bf16.mxu0 0
  %407 = vmatpush1.bf16.msra.mxu0 0
  %408 = vmatprep.subr.bf16.mxu0 0
  %409 = vmatpush1.bf16.msra.mxu0 0
  %410 = vmatprep.subr.bf16.mxu0 0
  %411 = vmatpush1.bf16.msra.mxu0 %v394
  %412 = vmatprep.subr.bf16.mxu0 0
  %413 = vmatpush2.bf16.msra.mxu0 0
  %414 = vmatprep.subr.bf16.mxu0 0
  %415 = vmatpush2.bf16.msra.mxu0 0
  %416 = vmatprep.subr.bf16.mxu0 0
  %417 = vmatpush2.bf16.msra.mxu0 0
  %418 = vmatprep.subr.bf16.mxu0 0
  %419 = vmatpush2.bf16.msra.mxu0 0
  %420 = vmatprep.subr.bf16.mxu0 0
  %421 = vmatpush2.bf16.msra.mxu0 0
  %422 = vmatprep.subr.bf16.mxu0 0
  %423 = vmatpush2.bf16.msra.mxu0 0
  %424 = vmatprep.subr.bf16.mxu0 0
  %425 = vmatpush2.bf16.msra.mxu0 0
  %426 = vmatprep.subr.bf16.mxu0 0
  %427 = vmatpush2.bf16.msra.mxu0 0
  %428 = vmatprep.mubr.bf16.mxu0 0
  %429 = vmatmul.mubr.bf16.gmra.mxu0 %v391
  %v430 = vpop.f32.mrf.mxu0
  %v431 = vadd.f32 0.0, %v430
  %v432 = vpop.f32.mrf.mxu0
  %v433 = vpop.f32.mrf.mxu0
  %v434 = vadd.f32 0.0, %v433
  %v435 = vpop.f32.mrf.mxu0
  %436 = vdwg.mxu0
  %v438 = vsel %vm46, %v282, 0
  %v441 = vsel %vm50, %v387, 0
  %443 = vmatprep.subr.bf16.mxu0 0
  %444 = vmatpush1.bf16.msra.mxu0 0
  %445 = vmatprep.subr.bf16.mxu0 0
  %446 = vmatpush1.bf16.msra.mxu0 0
  %447 = vmatprep.subr.bf16.mxu0 0
  %448 = vmatpush1.bf16.msra.mxu0 0
  %449 = vmatprep.subr.bf16.mxu0 0
  %450 = vmatpush1.bf16.msra.mxu0 0
  %451 = vmatprep.subr.bf16.mxu0 0
  %452 = vmatpush1.bf16.msra.mxu0 0
  %453 = vmatprep.subr.bf16.mxu0 0
  %454 = vmatpush1.bf16.msra.mxu0 0
  %455 = vmatprep.subr.bf16.mxu0 0
  %456 = vmatpush1.bf16.msra.mxu0 0
  %457 = vmatprep.subr.bf16.mxu0 0
  %458 = vmatpush1.bf16.msra.mxu0 %v441
  %459 = vmatprep.subr.bf16.mxu0 0
  %460 = vmatpush2.bf16.msra.mxu0 0
  %461 = vmatprep.subr.bf16.mxu0 0
  %462 = vmatpush2.bf16.msra.mxu0 0
  %463 = vmatprep.subr.bf16.mxu0 0
  %464 = vmatpush2.bf16.msra.mxu0 0
  %465 = vmatprep.subr.bf16.mxu0 0
  %466 = vmatpush2.bf16.msra.mxu0 0
  %467 = vmatprep.subr.bf16.mxu0 0
  %468 = vmatpush2.bf16.msra.mxu0 0
  %469 = vmatprep.subr.bf16.mxu0 0
  %470 = vmatpush2.bf16.msra.mxu0 0
  %471 = vmatprep.subr.bf16.mxu0 0
  %472 = vmatpush2.bf16.msra.mxu0 0
  %473 = vmatprep.subr.bf16.mxu0 0
  %474 = vmatpush2.bf16.msra.mxu0 0
  %475 = vmatprep.mubr.bf16.mxu0 0
  %476 = vmatmul.mubr.bf16.gmra.mxu0 %v438
  %v477 = vpop.f32.mrf.mxu0
  %v478 = vadd.f32 %v431, %v477
  %v479 = vpop.f32.mrf.mxu0
  %v480 = vpop.f32.mrf.mxu0
  %v481 = vadd.f32 %v434, %v480
  %v482 = vpop.f32.mrf.mxu0
  %483 = vdwg.mxu0
  %v484 = vpack.c.bf16 %v481, %v478
  %v485 = vld [vmem:[%s5] sm:$0xf]
  %v486 = vld [vmem:[%s5 + $0x4] sm:$0xf]
  %v489 = vunpack.c.l.b16 %v485
  %v490 = vunpack.c.l.b16 %v486
  %v491 = vpack.c.b16 %v490, %v489
  %v494 = vsel %vm104, %v484, 0
  %496 = vmatprep.subr.bf16.mxu0 0
  %497 = vmatpush1.bf16.msra.mxu0 0
  %498 = vmatprep.subr.bf16.mxu0 0
  %499 = vmatpush1.bf16.msra.mxu0 0
  %500 = vmatprep.subr.bf16.mxu0 0
  %501 = vmatpush1.bf16.msra.mxu0 0
  %502 = vmatprep.subr.bf16.mxu0 0
  %503 = vmatpush1.bf16.msra.mxu0 0
  %504 = vmatprep.subr.bf16.mxu0 0
  %505 = vmatpush1.bf16.msra.mxu0 0
  %506 = vmatprep.subr.bf16.mxu0 0
  %507 = vmatpush1.bf16.msra.mxu0 0
  %508 = vmatprep.subr.bf16.mxu0 0
  %509 = vmatpush1.bf16.msra.mxu0 0
  %510 = vmatprep.subr.bf16.mxu0 0
  %511 = vmatpush1.bf16.msra.mxu0 %v491
  %512 = vmatprep.subr.bf16.mxu0 0
  %513 = vmatpush2.bf16.msra.mxu0 0
  %514 = vmatprep.subr.bf16.mxu0 0
  %515 = vmatpush2.bf16.msra.mxu0 0
  %516 = vmatprep.subr.bf16.mxu0 0
  %517 = vmatpush2.bf16.msra.mxu0 0
  %518 = vmatprep.subr.bf16.mxu0 0
  %519 = vmatpush2.bf16.msra.mxu0 0
  %520 = vmatprep.subr.bf16.mxu0 0
  %521 = vmatpush2.bf16.msra.mxu0 0
  %522 = vmatprep.subr.bf16.mxu0 0
  %523 = vmatpush2.bf16.msra.mxu0 0
  %524 = vmatprep.subr.bf16.mxu0 0
  %525 = vmatpush2.bf16.msra.mxu0 0
  %526 = vmatprep.subr.bf16.mxu0 0
  %527 = vmatpush2.bf16.msra.mxu0 0
  %528 = vmatprep.mubr.bf16.mxu0 0
  %529 = vmatmul.mubr.bf16.gmra.mxu0 %v494
  %v530 = vpop.f32.mrf.mxu0
  %v531 = vadd.f32 0.0, %v530
  %v532 = vpop.f32.mrf.mxu0
  %v533 = vpop.f32.mrf.mxu0
  %v534 = vadd.f32 0.0, %v533
  %v535 = vpop.f32.mrf.mxu0
  %536 = vdwg.mxu0
  %537 = vxpose.xlu0.b32.start [1/16] %v531, 128
  %538 = vxpose.xlu0.b32.cont [2/16] %v534, 128
  %539 = vxpose.xlu0.b32.cont [3/16] 0.0, 128
  %540 = vxpose.xlu0.b32.cont [4/16] 0.0, 128
  %541 = vxpose.xlu0.b32.cont [5/16] 0.0, 128
  %542 = vxpose.xlu0.b32.cont [6/16] 0.0, 128
  %543 = vxpose.xlu0.b32.cont [7/16] 0.0, 128
  %544 = vxpose.xlu0.b32.cont [8/16] 0.0, 128
  %545 = vxpose.xlu0.b32.cont [9/16] 0.0, 128
  %546 = vxpose.xlu0.b32.cont [10/16] 0.0, 128
  %547 = vxpose.xlu0.b32.cont [11/16] 0.0, 128
  %548 = vxpose.xlu0.b32.cont [12/16] 0.0, 128
  %549 = vxpose.xlu0.b32.cont [13/16] 0.0, 128
  %550 = vxpose.xlu0.b32.cont [14/16] 0.0, 128
  %551 = vxpose.xlu0.b32.cont [15/16] 0.0, 128
  %552 = vxpose.xlu0.b32.end [16/16] 0.0, 128
  %v553 = vpop.trf.xlu0
  %v554 = vpop.trf.xlu0
  %v555 = vpop.trf.xlu0
  %v556 = vpop.trf.xlu0
  %v557 = vpop.trf.xlu0
  %v558 = vpop.trf.xlu0
  %v559 = vpop.trf.xlu0
  %v560 = vpop.trf.xlu0
  %v561 = vpop.trf.xlu0
  %v562 = vpop.trf.xlu0
  %v563 = vpop.trf.xlu0
  %v564 = vpop.trf.xlu0
  %v565 = vpop.trf.xlu0
  %v566 = vpop.trf.xlu0
  %v567 = vpop.trf.xlu0
  %v568 = vpop.trf.xlu0
  %570 = vset.pattern.permute.xlu0 0
  %571 = vperm.xlu0 %570, %v531
  %v572 = vpop.permute.xlu0 %571
  %575 = vset.pattern.permute.xlu0 0
  %576 = vperm.xlu0 %575, %v534
  %v577 = vpop.permute.xlu0 %576
  %v579 = vlaneseq
  %v580 = vshrl.u32 %v579, 7
  %v581 = vsub.s32 2, %v580
  %v582 = vrot.slane %v553, %v581
  %v583 = vadd.f32 %v572, %v582
  %v584 = vadd.f32 %v577, %v582
  %vm585 = vcmp.gt.f32.partialorder %v583, 0.0
  %vm586 = vcmp.gt.f32.partialorder %v584, 0.0
  %v587 = vmul.f32 %v583, 0.2
  %v588 = vmul.f32 %v584, 0.2
  %v589 = vsel %vm585, %v583, %v587
  %v590 = vsel %vm586, %v584, %v588
  %v591 = vsel %vm36, %v589, -9e+15
  %v592 = vsel %vm37, %v590, -9e+15
  %v593 = vsel %vm104, %v591, -inf
  %594 = vmax.xlane.f32.xlu0 %v593
  %v595 = vpop.xlane.xlu0 %594
  %v596 = vsel %vm104, %v592, -inf
  %597 = vmax.xlane.f32.xlu0 %v596
  %v598 = vpop.xlane.xlu0 %597
  %v599 = vsub.f32 %v591, %v595
  %v600 = vsub.f32 %v592, %v598
  %v601 = vmul.f32 %v599, 1.442695
  %v602 = vpow.pop %v601
  %v603 = vmul.f32 %v600, 1.442695
  %v604 = vpow.pop %v603
  %v605 = vsel %vm104, %v602, 0.0
  %606 = vadd.xlane.f32.xlu0 %v605
  %v607 = vpop.xlane.xlu0 %606
  %v608 = vsel %vm104, %v604, 0.0
  %609 = vadd.xlane.f32.xlu0 %v608
  %v610 = vpop.xlane.xlu0 %609
  %v611 = vrcp.pop %v607
  %v612 = vrcp.pop %v610
  %v613 = vmul.f32 %v602, %v611
  %v614 = vmul.f32 %v604, %v612
  %v615 = vpack.c.bf16 %v614, %v613
  %v617 = vsel %vm104, %v615, 0
  %619 = vmatprep.subr.bf16.mxu0 0
  %620 = vmatpush1.bf16.msra.mxu0 0
  %621 = vmatprep.subr.bf16.mxu0 0
  %622 = vmatpush1.bf16.msra.mxu0 0
  %623 = vmatprep.subr.bf16.mxu0 0
  %624 = vmatpush1.bf16.msra.mxu0 0
  %625 = vmatprep.subr.bf16.mxu0 0
  %626 = vmatpush1.bf16.msra.mxu0 0
  %627 = vmatprep.subr.bf16.mxu0 0
  %628 = vmatpush1.bf16.msra.mxu0 0
  %629 = vmatprep.subr.bf16.mxu0 0
  %630 = vmatpush1.bf16.msra.mxu0 0
  %631 = vmatprep.subr.bf16.mxu0 0
  %632 = vmatpush1.bf16.msra.mxu0 0
  %633 = vmatprep.subr.bf16.mxu0 0
  %634 = vmatpush1.bf16.msra.mxu0 %v484
  %635 = vmatprep.subr.bf16.mxu0 0
  %636 = vmatpush2.bf16.msra.mxu0 0
  %637 = vmatprep.subr.bf16.mxu0 0
  %638 = vmatpush2.bf16.msra.mxu0 0
  %639 = vmatprep.subr.bf16.mxu0 0
  %640 = vmatpush2.bf16.msra.mxu0 0
  %641 = vmatprep.subr.bf16.mxu0 0
  %642 = vmatpush2.bf16.msra.mxu0 0
  %643 = vmatprep.subr.bf16.mxu0 0
  %644 = vmatpush2.bf16.msra.mxu0 0
  %645 = vmatprep.subr.bf16.mxu0 0
  %646 = vmatpush2.bf16.msra.mxu0 0
  %647 = vmatprep.subr.bf16.mxu0 0
  %648 = vmatpush2.bf16.msra.mxu0 0
  %649 = vmatprep.subr.bf16.mxu0 0
  %650 = vmatpush2.bf16.msra.mxu0 0
  %651 = vmatprep.mubr.bf16.mxu0 0
  %652 = vmatmul.mubr.bf16.gmra.mxu0 %v617
  %v653 = vpop.f32.mrf.mxu0
  %v654 = vadd.f32 0.0, %v653
  %v655 = vpop.f32.mrf.mxu0
  %v656 = vpop.f32.mrf.mxu0
  %v657 = vadd.f32 0.0, %v656
  %v658 = vpop.f32.mrf.mxu0
  %659 = vdwg.mxu0
  %vm660 = vcmp.gt.f32.partialorder %v654, 0.0
  %vm661 = vcmp.gt.f32.partialorder %v657, 0.0
  %v662 = vmul.f32 %v654, 1.442695
  %v663 = vpow.pop %v662
  %v664 = vmul.f32 %v657, 1.442695
  %v665 = vpow.pop %v664
  %v666 = vsub.f32 %v663, 1.0
  %v667 = vsub.f32 %v665, 1.0
  %v668 = vsel %vm660, %v654, %v666
  %v669 = vsel %vm661, %v657, %v667
  %v670 = vpack.c.bf16 %v669, %v668
  %671 = vset.pattern.permute.xlu0 1
  %672 = vperm.xlu0 %671, %v531
  %v673 = vpop.permute.xlu0 %672
  %675 = vset.pattern.permute.xlu0 1
  %676 = vperm.xlu0 %675, %v534
  %v677 = vpop.permute.xlu0 %676
  %v679 = vlaneseq
  %v680 = vshrl.u32 %v679, 7
  %v681 = vsub.s32 3, %v680
  %v682 = vrot.slane %v553, %v681
  %v683 = vadd.f32 %v673, %v682
  %v684 = vadd.f32 %v677, %v682
  %vm685 = vcmp.gt.f32.partialorder %v683, 0.0
  %vm686 = vcmp.gt.f32.partialorder %v684, 0.0
  %v687 = vmul.f32 %v683, 0.2
  %v688 = vmul.f32 %v684, 0.2
  %v689 = vsel %vm685, %v683, %v687
  %v690 = vsel %vm686, %v684, %v688
  %v691 = vsel %vm36, %v689, -9e+15
  %v692 = vsel %vm37, %v690, -9e+15
  %v693 = vsel %vm104, %v691, -inf
  %694 = vmax.xlane.f32.xlu0 %v693
  %v695 = vpop.xlane.xlu0 %694
  %v696 = vsel %vm104, %v692, -inf
  %697 = vmax.xlane.f32.xlu0 %v696
  %v698 = vpop.xlane.xlu0 %697
  %v699 = vsub.f32 %v691, %v695
  %v700 = vsub.f32 %v692, %v698
  %v701 = vmul.f32 %v699, 1.442695
  %v702 = vpow.pop %v701
  %v703 = vmul.f32 %v700, 1.442695
  %v704 = vpow.pop %v703
  %v705 = vsel %vm104, %v702, 0.0
  %706 = vadd.xlane.f32.xlu0 %v705
  %v707 = vpop.xlane.xlu0 %706
  %v708 = vsel %vm104, %v704, 0.0
  %709 = vadd.xlane.f32.xlu0 %v708
  %v710 = vpop.xlane.xlu0 %709
  %v711 = vrcp.pop %v707
  %v712 = vrcp.pop %v710
  %v713 = vmul.f32 %v702, %v711
  %v714 = vmul.f32 %v704, %v712
  %v715 = vpack.c.bf16 %v714, %v713
  %717 = vrot.lane.b32.xlu0 %v484, 120
  %v718 = vpop.permute.xlu0 %717
  %v721 = vsel %vm104, %v715, 0
  %723 = vmatprep.subr.bf16.mxu0 0
  %724 = vmatpush1.bf16.msra.mxu0 0
  %725 = vmatprep.subr.bf16.mxu0 0
  %726 = vmatpush1.bf16.msra.mxu0 0
  %727 = vmatprep.subr.bf16.mxu0 0
  %728 = vmatpush1.bf16.msra.mxu0 0
  %729 = vmatprep.subr.bf16.mxu0 0
  %730 = vmatpush1.bf16.msra.mxu0 0
  %731 = vmatprep.subr.bf16.mxu0 0
  %732 = vmatpush1.bf16.msra.mxu0 0
  %733 = vmatprep.subr.bf16.mxu0 0
  %734 = vmatpush1.bf16.msra.mxu0 0
  %735 = vmatprep.subr.bf16.mxu0 0
  %736 = vmatpush1.bf16.msra.mxu0 0
  %737 = vmatprep.subr.bf16.mxu0 0
  %738 = vmatpush1.bf16.msra.mxu0 %v718
  %739 = vmatprep.subr.bf16.mxu0 0
  %740 = vmatpush2.bf16.msra.mxu0 0
  %741 = vmatprep.subr.bf16.mxu0 0
  %742 = vmatpush2.bf16.msra.mxu0 0
  %743 = vmatprep.subr.bf16.mxu0 0
  %744 = vmatpush2.bf16.msra.mxu0 0
  %745 = vmatprep.subr.bf16.mxu0 0
  %746 = vmatpush2.bf16.msra.mxu0 0
  %747 = vmatprep.subr.bf16.mxu0 0
  %748 = vmatpush2.bf16.msra.mxu0 0
  %749 = vmatprep.subr.bf16.mxu0 0
  %750 = vmatpush2.bf16.msra.mxu0 0
  %751 = vmatprep.subr.bf16.mxu0 0
  %752 = vmatpush2.bf16.msra.mxu0 0
  %753 = vmatprep.subr.bf16.mxu0 0
  %754 = vmatpush2.bf16.msra.mxu0 0
  %755 = vmatprep.mubr.bf16.mxu0 0
  %756 = vmatmul.mubr.bf16.gmra.mxu0 %v721
  %v757 = vpop.f32.mrf.mxu0
  %v758 = vadd.f32 0.0, %v757
  %v759 = vpop.f32.mrf.mxu0
  %v760 = vpop.f32.mrf.mxu0
  %v761 = vadd.f32 0.0, %v760
  %v762 = vpop.f32.mrf.mxu0
  %763 = vdwg.mxu0
  %vm764 = vcmp.gt.f32.partialorder %v758, 0.0
  %vm765 = vcmp.gt.f32.partialorder %v761, 0.0
  %v766 = vmul.f32 %v758, 1.442695
  %v767 = vpow.pop %v766
  %v768 = vmul.f32 %v761, 1.442695
  %v769 = vpow.pop %v768
  %v770 = vsub.f32 %v767, 1.0
  %v771 = vsub.f32 %v769, 1.0
  %v772 = vsel %vm764, %v758, %v770
  %v773 = vsel %vm765, %v761, %v771
  %v774 = vpack.c.bf16 %v773, %v772
  %v775 = vld [vmem:[%s6] sm:$0xf]
  %s776 = scalar_lea.vmem %s6, 4
  %v777 = vld [vmem:[%s776] sm:$0xf]
  %v779 = vsel %vm46, %v774, 0
  %v782 = vsel %vm50, %v777, 0
  %784 = vmatprep.subr.bf16.mxu0 0
  %785 = vmatpush1.bf16.msra.mxu0 0
  %786 = vmatprep.subr.bf16.mxu0 0
  %787 = vmatpush1.bf16.msra.mxu0 0
  %788 = vmatprep.subr.bf16.mxu0 0
  %789 = vmatpush1.bf16.msra.mxu0 0
  %790 = vmatprep.subr.bf16.mxu0 0
  %791 = vmatpush1.bf16.msra.mxu0 0
  %792 = vmatprep.subr.bf16.mxu0 0
  %793 = vmatpush1.bf16.msra.mxu0 0
  %794 = vmatprep.subr.bf16.mxu0 0
  %795 = vmatpush1.bf16.msra.mxu0 0
  %796 = vmatprep.subr.bf16.mxu0 0
  %797 = vmatpush1.bf16.msra.mxu0 0
  %798 = vmatprep.subr.bf16.mxu0 0
  %799 = vmatpush1.bf16.msra.mxu0 %v782
  %800 = vmatprep.subr.bf16.mxu0 0
  %801 = vmatpush2.bf16.msra.mxu0 0
  %802 = vmatprep.subr.bf16.mxu0 0
  %803 = vmatpush2.bf16.msra.mxu0 0
  %804 = vmatprep.subr.bf16.mxu0 0
  %805 = vmatpush2.bf16.msra.mxu0 0
  %806 = vmatprep.subr.bf16.mxu0 0
  %807 = vmatpush2.bf16.msra.mxu0 0
  %808 = vmatprep.subr.bf16.mxu0 0
  %809 = vmatpush2.bf16.msra.mxu0 0
  %810 = vmatprep.subr.bf16.mxu0 0
  %811 = vmatpush2.bf16.msra.mxu0 0
  %812 = vmatprep.subr.bf16.mxu0 0
  %813 = vmatpush2.bf16.msra.mxu0 0
  %814 = vmatprep.subr.bf16.mxu0 0
  %815 = vmatpush2.bf16.msra.mxu0 0
  %816 = vmatprep.mubr.bf16.mxu0 0
  %817 = vmatmul.mubr.bf16.gmra.mxu0 %v779
  %v818 = vpop.f32.mrf.mxu0
  %v819 = vadd.f32 0.0, %v818
  %v820 = vpop.f32.mrf.mxu0
  %v821 = vpop.f32.mrf.mxu0
  %v822 = vadd.f32 0.0, %v821
  %v823 = vpop.f32.mrf.mxu0
  %824 = vdwg.mxu0
  %v826 = vsel %vm46, %v670, 0
  %v829 = vsel %vm50, %v775, 0
  %831 = vmatprep.subr.bf16.mxu0 0
  %832 = vmatpush1.bf16.msra.mxu0 0
  %833 = vmatprep.subr.bf16.mxu0 0
  %834 = vmatpush1.bf16.msra.mxu0 0
  %835 = vmatprep.subr.bf16.mxu0 0
  %836 = vmatpush1.bf16.msra.mxu0 0
  %837 = vmatprep.subr.bf16.mxu0 0
  %838 = vmatpush1.bf16.msra.mxu0 0
  %839 = vmatprep.subr.bf16.mxu0 0
  %840 = vmatpush1.bf16.msra.mxu0 0
  %841 = vmatprep.subr.bf16.mxu0 0
  %842 = vmatpush1.bf16.msra.mxu0 0
  %843 = vmatprep.subr.bf16.mxu0 0
  %844 = vmatpush1.bf16.msra.mxu0 0
  %845 = vmatprep.subr.bf16.mxu0 0
  %846 = vmatpush1.bf16.msra.mxu0 %v829
  %847 = vmatprep.subr.bf16.mxu0 0
  %848 = vmatpush2.bf16.msra.mxu0 0
  %849 = vmatprep.subr.bf16.mxu0 0
  %850 = vmatpush2.bf16.msra.mxu0 0
  %851 = vmatprep.subr.bf16.mxu0 0
  %852 = vmatpush2.bf16.msra.mxu0 0
  %853 = vmatprep.subr.bf16.mxu0 0
  %854 = vmatpush2.bf16.msra.mxu0 0
  %855 = vmatprep.subr.bf16.mxu0 0
  %856 = vmatpush2.bf16.msra.mxu0 0
  %857 = vmatprep.subr.bf16.mxu0 0
  %858 = vmatpush2.bf16.msra.mxu0 0
  %859 = vmatprep.subr.bf16.mxu0 0
  %860 = vmatpush2.bf16.msra.mxu0 0
  %861 = vmatprep.subr.bf16.mxu0 0
  %862 = vmatpush2.bf16.msra.mxu0 0
  %863 = vmatprep.mubr.bf16.mxu0 0
  %864 = vmatmul.mubr.bf16.gmra.mxu0 %v826
  %v865 = vpop.f32.mrf.mxu0
  %v866 = vadd.f32 %v819, %v865
  %v867 = vpop.f32.mrf.mxu0
  %v868 = vpop.f32.mrf.mxu0
  %v869 = vadd.f32 %v822, %v868
  %v870 = vpop.f32.mrf.mxu0
  %871 = vdwg.mxu0
  %v872 = vld [vmem:[%s7] sm:$0x1]
  %v874 = vlaneseq
  %v875 = vshrl.u32 %v874, 7
  %v876 = vsub.s32 0, %v875
  %v877 = vrot.slane %v872, %v876
  %v879 = vadd.f32 %v866, %v877
  %v880 = vadd.f32 %v869, %v877
  %881 = vst [vmem:[%s8] sm:$0xff] %v879
  %882 = vst [vmem:[%s8 + $0x8] sm:$0xff] %v880
  // Predicated region
  $region34: #{fully_connected_gat_forward.1} parent=0 // pred_check
    _
  $region35: #{fully_connected_gat_forward.1} parent=0 // pred_check_branch
    %884 = sbr.rel (0) target = $region37
  $region36: #{fully_connected_gat_forward.1} parent=0 // pred_region
    _
  $region37: #{fully_connected_gat_forward.1} parent=0 // pred_fallthru
    _
  // Predicated region
  $region38: #{fully_connected_gat_forward.1} parent=0 // pred_check
    _
  $region39: #{fully_connected_gat_forward.1} parent=0 // pred_check_branch
    %886 = sbr.rel (0) target = $region41
  $region40: #{fully_connected_gat_forward.1} parent=0 // pred_region
    _
  $region41: #{fully_connected_gat_forward.1} parent=0 // pred_fallthru
    _

</llo_original>
